<compile_context>
chip_gen: v7x
topology: tpu7x:2x2x1
jax: 0.10.0
libtpu: 0.0.40
codegen_flags: <defaults>
</compile_context>

<pallas_src>
import functools

import jax
import jax.numpy as jnp
from jax.experimental import pallas as pl
from jax.experimental.pallas import tpu as pltpu

_MIB = 1024 * 1024
_TARGET_X_BLOCK = 2 * _MIB  # ~2 MiB padded x block per step (per-buffer sweet spot)


def _round_up(x, m):
    return ((x + m - 1) // m) * m


def _divisors(n):
    return [d for d in range(1, n + 1) if n % d == 0]


def _vpu_supports_bf16():
    # v6e / v7x VPUs are bf16-capable; v5e and older are not.
    try:
        kind = jax.devices()[0].device_kind.lower()
    except Exception:
        return False
    return not any(tag in kind for tag in ("v2", "v3", "v4", "v5"))


def _group_norm_kernel(x_ref, gamma_ref, beta_ref, o_ref, *, eps, n_per_group,
                       bf16_affine):
    # Rows layout:  x_ref (n_tile, g_tile, R, 128), gamma/beta (g_tile, R, 1)
    # Lanes layout: x_ref (n_tile, g_tile, L),      gamma/beta (g_tile, gL)
    x = x_ref[...]
    xf = x.astype(jnp.float32)
    red_axes = tuple(range(2, len(x_ref.shape)))  # per-(batch, group) reduction

    # One-pass statistics in f32: sum and sum of squares.  For normalized
    # activations this stays well within 1e-5 of the two-pass formula while
    # avoiding a full-block `diff` temporary.
    s1 = jnp.sum(xf, axis=red_axes, keepdims=True)
    s2 = jnp.sum(xf * xf, axis=red_axes, keepdims=True)
    mean = s1 * (1.0 / n_per_group)
    # Unbiased variance (torch.Tensor.std default: divide by n-1).  If a group
    # has a single element this yields inf/NaN, matching torch.std behavior.
    var = (s2 - s1 * mean) / (n_per_group - 1)
    std = jnp.sqrt(jnp.maximum(var, 0.0))

    # Fused normalize + affine: y = x * a + b with tiny per-group tensors.
    # Exact reciprocal (not approx): eps=1e-10 demands full precision.
    inv = 1.0 / (std + eps)
    gamma = gamma_ref[...].astype(jnp.float32)[None]
    beta = beta_ref[...].astype(jnp.float32)[None]
    a = gamma * inv
    b = beta - mean * a

    if bf16_affine:
        # bf16-capable VPU (v6e/v7x): keep the dominant elementwise pass in
        # bf16; a and b are tiny, cast once.
        o_ref[...] = (x * a.astype(x.dtype) + b.astype(x.dtype)).astype(o_ref.dtype)
    else:
        o_ref[...] = (xf * a + b).astype(o_ref.dtype)


def _ensure_two_steps_rows(N, G, n_tile, g_tile):
    # v7x has 2 TensorCores: keep at least 2 parallel grid steps when possible.
    if (N // n_tile) * (G // g_tile) >= 2:
        return n_tile, g_tile
    if N > 1:
        return max(d for d in _divisors(N) if d < N), g_tile
    if G > 1:
        return n_tile, max(d for d in _divisors(G) if d < G)
    return n_tile, g_tile


def _pick_tiles_rows(N, G, R, itemsize, sub_mult):
    # Padded bytes of one group's (R, 128) tile.
    group_bytes = _round_up(R, sub_mult) * 128 * itemsize
    g_tile = 1
    for d in _divisors(G):
        if d * group_bytes <= _TARGET_X_BLOCK:
            g_tile = d
    # Fold batch items into the block when groups are small (>= ~1 MiB steps).
    n_tile = 1
    for d in _divisors(N):
        if d * g_tile * group_bytes <= _TARGET_X_BLOCK:
            n_tile = d
    n_tile, g_tile = _ensure_two_steps_rows(N, G, n_tile, g_tile)
    block_bytes = n_tile * g_tile * group_bytes
    return n_tile, g_tile, block_bytes


def _pick_tiles_lanes(N, G, L, itemsize, sub_mult):
    lane_bytes = _round_up(L, 128) * itemsize
    # g_tile is the sublane dim: must be a multiple of the packing (or G itself).
    cands = sorted({d for d in _divisors(G) if d % sub_mult == 0} | {G})
    g_tile = cands[0]
    for d in cands:
        if _round_up(d, sub_mult) * lane_bytes <= _TARGET_X_BLOCK:
            g_tile = d
    n_tile = 1
    for d in _divisors(N):
        if d * _round_up(g_tile, sub_mult) * lane_bytes <= _TARGET_X_BLOCK:
            n_tile = d
    if (N // n_tile) * (G // g_tile) < 2:
        if N > 1:
            n_tile = max(d for d in _divisors(N) if d < N)
        else:
            smaller = [d for d in cands if d < G]
            if smaller:
                g_tile = max(smaller)
    block_bytes = n_tile * _round_up(g_tile, sub_mult) * lane_bytes * 1
    return n_tile, g_tile, block_bytes


def _vmem_limit_bytes(block_bytes_padded, itemsize):
    # 2x double-buffered input + 2x double-buffered output (same shape/dtype)
    io = 4 * block_bytes_padded
    # In-kernel full-block f32 temporaries (xf and one product/affine temp).
    f32_block = (block_bytes_padded // itemsize) * 4
    est = io + 2 * f32_block
    # Explicit limit instead of the scoped default; 48 MiB stays below v7x's
    # 64 MiB physical VMEM and well below v5e/v6e's 128 MiB.
    return int(min(max(est + 8 * _MIB, 16 * _MIB), 48 * _MIB))


def group_norm(x, gamma, beta, group_num=16, eps=1e-10):
    """x: (N, C, H, W); gamma, beta: (C, 1, 1). Returns (N, C, H, W)."""
    N, C, H, W = x.shape
    hw = H * W
    total = C * hw
    G = group_num
    assert total % G == 0, "C*H*W must be divisible by group_num"
    L = total // G  # elements per group (torch view(N, G, -1))

    itemsize = jnp.dtype(x.dtype).itemsize
    sub_mult = max(8, 32 // itemsize)  # sublane packing: 8 f32, 16 bf16, 32 i8
    bf16_affine = (x.dtype == jnp.bfloat16) and _vpu_supports_bf16()

    gamma_c = gamma.reshape(C)
    beta_c = beta.reshape(C)

    # Layout choice: "rows" (lane-dense, 128-wide rows, per-row affine) when
    # each 128-row lies inside a single channel; otherwise "lanes" fallback
    # (groups packed onto sublanes, whole group along the lane axis).
    use_rows = (L % 128 == 0) and ((G % C == 0) or (C % G == 0 and hw % 128 == 0))

    # TODO(synk): a single group larger than the VMEM block budget (huge H*W)
    # would need a two-pass streaming reduction over an inner tile axis; not
    # implemented — such a group is taken as one (oversized) block.

    if use_rows:
        R = L // 128
        x_g = x.reshape(N, G, R, 128)
        if C % G == 0 and hw % 128 == 0:
            # K = C//G whole channels per group; each channel spans rc rows.
            K = C // G
            rc = hw // 128
            gamma_g = jnp.repeat(gamma_c.reshape(G, K), rc, axis=1).reshape(G, R, 1)
            beta_g = jnp.repeat(beta_c.reshape(G, K), rc, axis=1).reshape(G, R, 1)
        else:
            # G % C == 0: each group lies inside one channel -> constant affine.
            rep = G // C
            gamma_g = jnp.broadcast_to(jnp.repeat(gamma_c, rep)[:, None, None], (G, R, 1))
            beta_g = jnp.broadcast_to(jnp.repeat(beta_c, rep)[:, None, None], (G, R, 1))

        n_tile, g_tile, block_bytes = _pick_tiles_rows(N, G, R, itemsize, sub_mult)
        grid = (N // n_tile, G // g_tile)
        in_specs = [
            pl.BlockSpec((n_tile, g_tile, R, 128), lambda n, g: (n, g, 0, 0)),
            pl.BlockSpec((g_tile, R, 1), lambda n, g: (g, 0, 0)),
            pl.BlockSpec((g_tile, R, 1), lambda n, g: (g, 0, 0)),
        ]
        out_specs = pl.BlockSpec((n_tile, g_tile, R, 128), lambda n, g: (n, g, 0, 0))
    else:
        # Lanes fallback: groups on the sublane axis, whole group on the lane
        # axis (lane dim may be < 128 -> masked stores, only hit for tiny L).
        x_g = x.reshape(N, G, L)
        if G % C == 0:
            # Each group lies inside one channel -> one scalar per group.
            rep = G // C
            gamma_g = jnp.repeat(gamma_c, rep).reshape(G, 1)
            beta_g = jnp.repeat(beta_c, rep).reshape(G, 1)
        else:
            # Groups span (parts of) several channels: per-lane affine within
            # each group (C*H*W affine elements; fallback correctness path).
            gamma_g = jnp.broadcast_to(gamma_c[:, None], (C, hw)).reshape(G, L)
            beta_g = jnp.broadcast_to(beta_c[:, None], (C, hw)).reshape(G, L)
        gL = gamma_g.shape[1]

        n_tile, g_tile, block_bytes = _pick_tiles_lanes(N, G, L, itemsize, sub_mult)
        grid = (N // n_tile, G // g_tile)
        in_specs = [
            pl.BlockSpec((n_tile, g_tile, L), lambda n, g: (n, g, 0)),
            pl.BlockSpec((g_tile, gL), lambda n, g: (g, 0)),
            pl.BlockSpec((g_tile, gL), lambda n, g: (g, 0)),
        ]
        out_specs = pl.BlockSpec((n_tile, g_tile, L), lambda n, g: (n, g, 0))

    vmem_limit = _vmem_limit_bytes(block_bytes, itemsize)

    out = pl.pallas_call(
        functools.partial(_group_norm_kernel, eps=eps, n_per_group=L,
                          bf16_affine=bf16_affine),
        out_shape=jax.ShapeDtypeStruct(x_g.shape, x.dtype),
        grid=grid,
        in_specs=in_specs,
        out_specs=out_specs,
        compiler_params=pltpu.CompilerParams(
            dimension_semantics=("parallel", "parallel"),
            vmem_limit_bytes=vmem_limit),
    )(x_g, gamma_g, beta_g)

    return out.reshape(N, C, H, W)


def _group_norm_ref(x, gamma, beta, group_num=16, eps=1e-10):
    # Pure-JAX reference mirroring the PyTorch forward (for verification).
    N, C, H, W = x.shape
    xg = x.reshape(N, group_num, -1)
    L = xg.shape[-1]
    mean = jnp.mean(xg, axis=2, keepdims=True)
    std = jnp.sqrt(jnp.sum((xg - mean) ** 2, axis=2, keepdims=True) / (L - 1))
    xn = (xg - mean) / (std + eps)
    xn = xn.reshape(N, C, H, W)
    return xn * gamma.reshape(1, C, 1, 1) + beta.reshape(1, C, 1, 1)


if __name__ == "__main__":
    key = jax.random.PRNGKey(0)
    eps = 1e-10

    # Config 1: the module's demo-style shape (G % C == 0, L=64 -> lanes layout).
    N, C, H, W = 2, 4, 16, 16
    group_num = 16
    k1, k2, k3, k4 = jax.random.split(key, 4)
    x = jax.random.normal(k1, (N, C, H, W), dtype=jnp.float32)
    gamma = 1.0 + 0.1 * jax.random.normal(k2, (C, 1, 1), dtype=jnp.float32)
    beta = 0.1 * jax.random.normal(k3, (C, 1, 1), dtype=jnp.float32)

    out = group_norm(x, gamma, beta, group_num=group_num, eps=eps)
    out = jax.block_until_ready(out)
    ref = _group_norm_ref(x, gamma, beta, group_num=group_num, eps=eps)
    assert out.shape == (N, C, H, W)
    assert jnp.allclose(out, ref, atol=1e-5, rtol=1e-5)

    # Config 2: standard GroupNorm layout (C % G == 0, hw % 128 == 0 -> rows layout).
    N2, C2, H2, W2, G2 = 2, 32, 16, 16, 8
    x2 = jax.random.normal(k4, (N2, C2, H2, W2), dtype=jnp.float32)
    gamma2 = 1.0 + 0.1 * jax.random.normal(k2, (C2, 1, 1), dtype=jnp.float32)
    beta2 = 0.1 * jax.random.normal(k3, (C2, 1, 1), dtype=jnp.float32)

    out2 = group_norm(x2, gamma2, beta2, group_num=G2, eps=eps)
    out2 = jax.block_until_ready(out2)
    ref2 = _group_norm_ref(x2, gamma2, beta2, group_num=G2, eps=eps)
    assert out2.shape == (N2, C2, H2, W2)
    assert jnp.allclose(out2, ref2, atol=1e-5, rtol=1e-5)

    print("KERNEL_OK")
</pallas_src>

<mosaic_0001>
module attributes {stable_mosaic.version = 11 : i64} {
  func.func @_group_norm_kernel(%arg0: i32, %arg1: i32, %arg2: memref<1x16x64xf32, #tpu.memory_space<vmem>>, %arg3: memref<16x1xf32, #tpu.memory_space<vmem>>, %arg4: memref<16x1xf32, #tpu.memory_space<vmem>>, %arg5: memref<1x16x64xf32, #tpu.memory_space<vmem>>) attributes {dimension_semantics = [#tpu.dimension_semantics<parallel>, #tpu.dimension_semantics<parallel>], iteration_bounds = array<i64: 2, 1>, scalar_prefetch = 0 : i64, scratch_operands = 0 : i64, tpu.core_type = #tpu.core_type<tc>, window_params = [{transform_indices = @transform_0, window_bounds = array<i64: 1, 16, 64>}, {transform_indices = @transform_1, window_bounds = array<i64: 16, 1>}, {transform_indices = @transform_2, window_bounds = array<i64: 16, 1>}, {transform_indices = @transform_3, window_bounds = array<i64: 1, 16, 64>}]} {
    %c0 = arith.constant 0 : index
    %c0_0 = arith.constant 0 : index
    %c0_1 = arith.constant 0 : index
    %0 = vector.load %arg2[%c0, %c0_0, %c0_1] : memref<1x16x64xf32, #tpu.memory_space<vmem>>, vector<1x16x64xf32>
    %cst = arith.constant dense<0.000000e+00> : vector<1x16xf32>
    %1 = vector.multi_reduction <add>, %0, %cst [2] : vector<1x16x64xf32> to vector<1x16xf32>
    %2 = vector.shape_cast %1 : vector<1x16xf32> to vector<1x16x1xf32>
    %3 = arith.mulf %0, %0 : vector<1x16x64xf32>
    %cst_2 = arith.constant dense<0.000000e+00> : vector<1x16xf32>
    %4 = vector.multi_reduction <add>, %3, %cst_2 [2] : vector<1x16x64xf32> to vector<1x16xf32>
    %5 = vector.shape_cast %4 : vector<1x16xf32> to vector<1x16x1xf32>
    %cst_3 = arith.constant 1.562500e-02 : f32
    %6 = vector.broadcast %cst_3 : f32 to vector<1x16x1xf32>
    %7 = arith.mulf %2, %6 : vector<1x16x1xf32>
    %8 = arith.mulf %2, %7 : vector<1x16x1xf32>
    %9 = arith.subf %5, %8 : vector<1x16x1xf32>
    %cst_4 = arith.constant 6.300000e+01 : f32
    %10 = vector.broadcast %cst_4 : f32 to vector<1x16x1xf32>
    %11 = arith.divf %9, %10 : vector<1x16x1xf32>
    %cst_5 = arith.constant 0.000000e+00 : f32
    %12 = vector.broadcast %cst_5 : f32 to vector<1x16x1xf32>
    %13 = arith.maximumf %11, %12 : vector<1x16x1xf32>
    %14 = math.sqrt %13 : vector<1x16x1xf32>
    %cst_6 = arith.constant 1.000000e-10 : f32
    %15 = vector.broadcast %cst_6 : f32 to vector<1x16x1xf32>
    %16 = arith.addf %14, %15 : vector<1x16x1xf32>
    %cst_7 = arith.constant 1.000000e+00 : f32
    %17 = vector.broadcast %cst_7 : f32 to vector<1x16x1xf32>
    %18 = arith.divf %17, %16 : vector<1x16x1xf32>
    %c0_8 = arith.constant 0 : index
    %c0_9 = arith.constant 0 : index
    %19 = vector.load %arg3[%c0_8, %c0_9] : memref<16x1xf32, #tpu.memory_space<vmem>>, vector<16x1xf32>
    %20 = vector.shape_cast %19 : vector<16x1xf32> to vector<1x16x1xf32>
    %c0_10 = arith.constant 0 : index
    %c0_11 = arith.constant 0 : index
    %21 = vector.load %arg4[%c0_10, %c0_11] : memref<16x1xf32, #tpu.memory_space<vmem>>, vector<16x1xf32>
    %22 = vector.shape_cast %21 : vector<16x1xf32> to vector<1x16x1xf32>
    %23 = arith.mulf %20, %18 : vector<1x16x1xf32>
    %24 = arith.mulf %7, %23 : vector<1x16x1xf32>
    %25 = arith.subf %22, %24 : vector<1x16x1xf32>
    %26 = vector.broadcast %23 : vector<1x16x1xf32> to vector<1x16x64xf32>
    %27 = arith.mulf %0, %26 : vector<1x16x64xf32>
    %28 = vector.broadcast %25 : vector<1x16x1xf32> to vector<1x16x64xf32>
    %29 = arith.addf %27, %28 : vector<1x16x64xf32>
    %c0_12 = arith.constant 0 : index
    %c0_13 = arith.constant 0 : index
    %c0_14 = arith.constant 0 : index
    %30 = vector.load %arg5[%c0_12, %c0_13, %c0_14] : memref<1x16x64xf32, #tpu.memory_space<vmem>>, vector<1x16x64xf32>
    tpu.vector_store %arg5[%c0_12, %c0_13, %c0_14], %29 {strides = array<i32>} : memref<1x16x64xf32, #tpu.memory_space<vmem>>, vector<1x16x64xf32>,
    return
  }
  func.func @transform_0(%arg0: i32, %arg1: i32) -> (i32, i32, i32) {
    %c0_i32 = arith.constant 0 : i32
    %c0_i32_0 = arith.constant 0 : i32
    return %arg0, %arg1, %c0_i32 : i32, i32, i32
  }
  func.func @transform_1(%arg0: i32, %arg1: i32) -> (i32, i32) {
    %c0_i32 = arith.constant 0 : i32
    %c0_i32_0 = arith.constant 0 : i32
    return %arg1, %c0_i32 : i32, i32
  }
  func.func @transform_2(%arg0: i32, %arg1: i32) -> (i32, i32) {
    %c0_i32 = arith.constant 0 : i32
    %c0_i32_0 = arith.constant 0 : i32
    return %arg1, %c0_i32 : i32, i32
  }
  func.func @transform_3(%arg0: i32, %arg1: i32) -> (i32, i32, i32) {
    %c0_i32 = arith.constant 0 : i32
    %c0_i32_0 = arith.constant 0 : i32
    return %arg0, %arg1, %c0_i32 : i32, i32, i32
  }
}

</mosaic_0001>

<llo_original>
// kernel: tpu_custom_call.1
$region0: #{tpu_custom_call.1}
  #allocation0 [shape = 'u32[]', space=smem, size = 0x4, offset = 0x4, fixed_abs, tag = 'smem constant byte address 0x4 - core index']
  #allocation1 [shape = 'u32[144,128]{1,0:T(1,128)}', space=vmem, size = 0x12000, scoped, tag = 'internal scratch']
  %s0 = inlined_call_operand.vmem [shape: f32[2,16,64], index: 0, kind: input, shape index: {}]
  %s1 = inlined_call_operand.vmem [shape: f32[16,1], index: 1, kind: input, shape index: {}]
  %s2 = inlined_call_operand.vmem [shape: f32[16,1], index: 2, kind: input, shape index: {}]
  %s3 = inlined_call_operand.hbm [shape: f32[2,16,64], index: 3, kind: output, shape index: {}]
  %s4 = sld [smem:[#allocation0]]
  $region45: #{tpu_custom_call.1} parent=0
    _
  %s6 = ssub.s32 1, %s4
  %s7 = scalar_select 0, %s6, %s4
  $region1: #{tpu_custom_call.1} parent=0
    #allocation2 [shape = 'u8[16384]{0}', space=vmem, size = 0x4000, scoped, tag = 'output window, operand 0']
    #allocation3 [shape = 's32[2]{0}', space=sflag, size = 0x8, scoped, tag = 'scoped memory for tpu_custom_call.1']
    %8 = vsyncpa [#allocation3], 0
    %s9 = scalar_lea.sflag [#allocation3], 1
    %10 = vsyncpa %s9, 0
    loop: start=0, step=1, limit=4
    $region2: #{tpu_custom_call.1} parent=1 // loop_pre_header
      _
    $region3: #{tpu_custom_call.1} parent=1 // loop_header
      %s12 = sphi 0, %s16
      %p13 = scmp.ge.s32.totalorder %s12, 4
      %s19 = sphi 0, %s31
      %s20 = sphi 0, %s27
      %s21 = sphi 0, %s19
      %s22 = sphi 0, %s20
      %s23 = sphi 0, %s21
      %s24 = sphi 0, %s22
      %s36 = sphi 0, %s38
      %s39 = sphi 0, %s36
      %s40 = sphi 0, %s39
      %s56 = sphi 0, %s40
      %s62 = sphi 0, %s64
      %s65 = sphi 0, %s62
      %s66 = sphi 0, %s65
      %s82 = sphi 0, %s66
      %s88 = sphi 0, %s90
      %s91 = sphi 0, %s88
      %s92 = sphi 0, %s91
      %s108 = sphi 0, %s92
      %s116 = sphi 0, %s118
      %s119 = sphi 0, %s116
      %s120 = sphi 0, %s119
      %s136 = sphi 0, %s120
    $region4: #{tpu_custom_call.1} parent=1 // loop_header_branch
      %15 = sbr.rel (%p13) target = $region8
    $region5: #{tpu_custom_call.1} parent=1 // loop_body
      %s17 = ssub.s32 %s12, 1
      %s18 = ssub.s32 %s12, 2
      %s25 = sadd.s32 1, %s20
      %p26 = scmp.ge.s32.totalorder %s25, 1
      %s27 = scalar_select %p26, 0, %s25
      %s28 = sadd.s32 1, %s19
      %s29 = scalar_select %p26, %s28, %s19
      %p30 = scmp.ge.s32.totalorder %s29, 2
      %s31 = scalar_select %p30, 0, %s29
      %s32 = ssub.s32 %s19, %s31
      %s33 = ssub.s32 %s20, %s27
      %s34 = sor.u32 %s32, %s33
      %p35 = scmp.eq.s32.totalorder %s34, 0
      %s37 = sadd.s32 %s36, 1
      %s38 = scalar_select %p35, %s36, %s37
      %p41 = pneg %p35
      %p42 = scmp.eq.s32.totalorder %s12, 1
      %p43 = por %p41, %p42
      %p44 = scmp.ne.s32.totalorder %s36, %s39
      %p45 = scmp.eq.s32.totalorder %s12, 0
      %p46 = por %p44, %p45
      %p47 = scmp.ne.s32.totalorder %s36, %s39
      %p48 = scmp.eq.s32.totalorder %s17, 1
      %p49 = por %p47, %p48
      %p50 = scmp.ne.s32.totalorder %s39, %s40
      %p51 = scmp.eq.s32.totalorder %s17, 0
      %p52 = por %p50, %p51
      %p53 = scmp.ne.s32.totalorder %s39, %s40
      %p54 = scmp.eq.s32.totalorder %s18, 1
      %p55 = por %p53, %p54
      %p57 = scmp.ne.s32.totalorder %s40, %s56
      %p58 = scmp.eq.s32.totalorder %s18, 0
      %p59 = por %p57, %p58
      %s60 = ssub.s32 %s20, %s27
      %p61 = scmp.eq.s32.totalorder %s60, 0
      %s63 = sadd.s32 %s62, 1
      %s64 = scalar_select %p61, %s62, %s63
      %p67 = pneg %p61
      %p68 = scmp.eq.s32.totalorder %s12, 1
      %p69 = por %p67, %p68
      %p70 = scmp.ne.s32.totalorder %s62, %s65
      %p71 = scmp.eq.s32.totalorder %s12, 0
      %p72 = por %p70, %p71
      %p73 = scmp.ne.s32.totalorder %s62, %s65
      %p74 = scmp.eq.s32.totalorder %s17, 1
      %p75 = por %p73, %p74
      %p76 = scmp.ne.s32.totalorder %s65, %s66
      %p77 = scmp.eq.s32.totalorder %s17, 0
      %p78 = por %p76, %p77
      %p79 = scmp.ne.s32.totalorder %s65, %s66
      %p80 = scmp.eq.s32.totalorder %s18, 1
      %p81 = por %p79, %p80
      %p83 = scmp.ne.s32.totalorder %s66, %s82
      %p84 = scmp.eq.s32.totalorder %s18, 0
      %p85 = por %p83, %p84
      %s86 = ssub.s32 %s20, %s27
      %p87 = scmp.eq.s32.totalorder %s86, 0
      %s89 = sadd.s32 %s88, 1
      %s90 = scalar_select %p87, %s88, %s89
      %p93 = pneg %p87
      %p94 = scmp.eq.s32.totalorder %s12, 1
      %p95 = por %p93, %p94
      %p96 = scmp.ne.s32.totalorder %s88, %s91
      %p97 = scmp.eq.s32.totalorder %s12, 0
      %p98 = por %p96, %p97
      %p99 = scmp.ne.s32.totalorder %s88, %s91
      %p100 = scmp.eq.s32.totalorder %s17, 1
      %p101 = por %p99, %p100
      %p102 = scmp.ne.s32.totalorder %s91, %s92
      %p103 = scmp.eq.s32.totalorder %s17, 0
      %p104 = por %p102, %p103
      %p105 = scmp.ne.s32.totalorder %s91, %s92
      %p106 = scmp.eq.s32.totalorder %s18, 1
      %p107 = por %p105, %p106
      %p109 = scmp.ne.s32.totalorder %s92, %s108
      %p110 = scmp.eq.s32.totalorder %s18, 0
      %p111 = por %p109, %p110
      %s112 = ssub.s32 %s19, %s31
      %s113 = ssub.s32 %s20, %s27
      %s114 = sor.u32 %s112, %s113
      %p115 = scmp.eq.s32.totalorder %s114, 0
      %s117 = sadd.s32 %s116, 1
      %s118 = scalar_select %p115, %s116, %s117
      %p121 = pneg %p115
      %p122 = scmp.eq.s32.totalorder %s12, 1
      %p123 = por %p121, %p122
      %p124 = scmp.ne.s32.totalorder %s116, %s119
      %p125 = scmp.eq.s32.totalorder %s12, 0
      %p126 = por %p124, %p125
      %p127 = scmp.ne.s32.totalorder %s116, %s119
      %p128 = scmp.eq.s32.totalorder %s17, 1
      %p129 = por %p127, %p128
      %p130 = scmp.ne.s32.totalorder %s119, %s120
      %p131 = scmp.eq.s32.totalorder %s17, 0
      %p132 = por %p130, %p131
      %p133 = scmp.ne.s32.totalorder %s119, %s120
      %p134 = scmp.eq.s32.totalorder %s18, 1
      %p135 = por %p133, %p134
      %p137 = scmp.ne.s32.totalorder %s120, %s136
      %p138 = scmp.eq.s32.totalorder %s18, 0
      %p139 = por %p137, %p138
      %p140 = scmp.le.s32.totalorder 1, %s12
      %p141 = scmp.lt.s32.totalorder %s12, 3
      %p142 = pnand %p140, %p141
      %p143 = pneg %p142
      // Predicated region
      $region9: #{tpu_custom_call.1} parent=5 // pred_check
        _
      $region10: #{tpu_custom_call.1} parent=5 // pred_check_branch
        %145 = sbr.rel (%p142) target = $region12
      $region11: #{tpu_custom_call.1} parent=5 // pred_region
        %s146 = ssub.s32 %s12, 1
        // Predicated region
        $region13: #{tpu_custom_call.1} parent=11 // pred_check
          %p147 = pneg %p78
        $region14: #{tpu_custom_call.1} parent=11 // pred_check_branch
          %149 = sbr.rel (%p147) target = $region16
        $region15: #{tpu_custom_call.1} parent=11 // pred_region
          %s150 = smul.u32 2, %s22
          %p151 = scmp.lt.s32.totalorder %s150, 1
          %s152 = scalar_select %p151, %s150, 1
          %s153 = smul.addr %s152, 8
          %s154 = scalar_lea.vmem %s1, %s153
          %s155 = smul.u32 2, %s22
        $region16: #{tpu_custom_call.1} parent=11 // pred_fallthru
          _
        // Predicated region
        $region17: #{tpu_custom_call.1} parent=11 // pred_check
          %p156 = pneg %p104
        $region18: #{tpu_custom_call.1} parent=11 // pred_check_branch
          %158 = sbr.rel (%p156) target = $region20
        $region19: #{tpu_custom_call.1} parent=11 // pred_region
          %s159 = smul.u32 2, %s22
          %p160 = scmp.lt.s32.totalorder %s159, 1
          %s161 = scalar_select %p160, %s159, 1
          %s162 = smul.addr %s161, 8
          %s163 = scalar_lea.vmem %s2, %s162
          %s164 = smul.u32 2, %s22
        $region20: #{tpu_custom_call.1} parent=11 // pred_fallthru
          _
      $region12: #{tpu_custom_call.1} parent=5 // pred_fallthru
        _
      %p165 = scmp.lt.s32.totalorder %s12, 2
      // Predicated region
      $region21: #{tpu_custom_call.1} parent=5 // pred_check
        %p166 = pneg %p165
      $region22: #{tpu_custom_call.1} parent=5 // pred_check_branch
        %168 = sbr.rel (%p166) target = $region24
      $region23: #{tpu_custom_call.1} parent=5 // pred_region
        // Predicated region
        $region25: #{tpu_custom_call.1} parent=23 // pred_check
          %p169 = pneg %p46
        $region26: #{tpu_custom_call.1} parent=23 // pred_check_branch
          %171 = sbr.rel (%p169) target = $region28
        $region27: #{tpu_custom_call.1} parent=23 // pred_region
          %s172 = smul.u32 2, %s20
          %p173 = scmp.lt.s32.totalorder %s19, 1
          %s174 = scalar_select %p173, %s19, 1
          %p175 = scmp.lt.s32.totalorder %s172, 1
          %s176 = scalar_select %p175, %s172, 1
          %s177 = smul.addr %s174, 2
          %s178 = sadd.s32 %s176, %s177
          %s179 = smul.addr %s178, 8
          %s180 = scalar_lea.vmem %s0, %s179
          %s181 = smul.u32 2, %s20
        $region28: #{tpu_custom_call.1} parent=23 // pred_fallthru
          _
      $region24: #{tpu_custom_call.1} parent=5 // pred_fallthru
        _
      %p182 = scmp.le.s32.totalorder 1, %s12
      %p183 = scmp.lt.s32.totalorder %s12, 3
      %p184 = pnand %p182, %p183
      %p185 = pneg %p184
      // Predicated region
      $region29: #{tpu_custom_call.1} parent=5 // pred_check
        _
      $region30: #{tpu_custom_call.1} parent=5 // pred_check_branch
        %187 = sbr.rel (%p184) target = $region32
      $region31: #{tpu_custom_call.1} parent=5 // pred_region
        %s188 = ssub.s32 %s12, 1
        %s189 = smul.u32 2, %s22
        %p190 = scmp.lt.s32.totalorder %s21, 1
        %s191 = scalar_select %p190, %s21, 1
        %p192 = scmp.lt.s32.totalorder %s189, 1
        %s193 = scalar_select %p192, %s189, 1
        %s194 = smul.addr %s191, 2
        %s195 = sadd.s32 %s193, %s194
        %s196 = smul.addr %s195, 8
        %s197 = scalar_lea.vmem %s0, %s196
        %p198 = pneg %p52
        %p199 = pneg %p49
        %s200 = smul.u32 2, %s22
        %p201 = scmp.lt.s32.totalorder %s200, 1
        %s202 = scalar_select %p201, %s200, 1
        %s203 = smul.addr %s202, 8
        %s204 = scalar_lea.vmem %s1, %s203
        %p205 = pneg %p78
        %p206 = pneg %p75
        %s207 = smul.u32 2, %s22
        %p208 = scmp.lt.s32.totalorder %s207, 1
        %s209 = scalar_select %p208, %s207, 1
        %s210 = smul.addr %s209, 8
        %s211 = scalar_lea.vmem %s2, %s210
        %p212 = pneg %p104
        %p213 = pneg %p101
        %p214 = pneg %p132
        %p215 = pneg %p129
        %s216 = sand.u32 %s119, 1
        %s217 = scalar_lea.sflag [#allocation3], %s216
        %s218 = sand.u32 %s119, 1
        %s219 = smul.addr %s218, 16
        %s220 = scalar_lea.vmem [#allocation2], %s219
        %s221 = smul.u32 2, %s22
        %p222 = scmp.lt.s32.totalorder %s21, 1
        %s223 = scalar_select %p222, %s21, 1
        %p224 = scmp.lt.s32.totalorder %s221, 1
        %s225 = scalar_select %p224, %s221, 1
        %s226 = smul.addr %s223, 2
        %s227 = sadd.s32 %s225, %s226
        %s228 = smul.addr %s227, 8
        %s229 = scalar_lea.vmem %s0, %s228
        %s230 = smul.u32 2, %s22
        %s231 = smul.u32 2, %s22
        %p232 = scmp.lt.s32.totalorder %s231, 1
        %s233 = scalar_select %p232, %s231, 1
        %s234 = smul.addr %s233, 8
        %s235 = scalar_lea.vmem %s1, %s234
        %s236 = smul.u32 2, %s22
        %s237 = smul.u32 2, %s22
        %p238 = scmp.lt.s32.totalorder %s237, 1
        %s239 = scalar_select %p238, %s237, 1
        %s240 = smul.addr %s239, 8
        %s241 = scalar_lea.vmem %s2, %s240
        %s242 = smul.u32 2, %s22
        %s243 = smul.u32 2, %s22
        %v244 = vld [vmem:[%s229] sm:$0xff]
        %v245 = vld [vmem:[%s229 + $0x8] sm:$0xff]
        %vm246 = vcmask 523264
        %v247 = vsel %vm246, %v244, 0.0
        %248 = vadd.xlane.f32.xlu0 %v247
        %v249 = vpop.xlane.xlu0 %248
        %v250 = vsel %vm246, %v245, 0.0
        %251 = vadd.xlane.f32.xlu0 %v250
        %v252 = vpop.xlane.xlu0 %251
        %v253 = vmul.f32 %v244, %v244
        %v254 = vmul.f32 %v245, %v245
        %v255 = vsel %vm246, %v253, 0.0
        %256 = vadd.xlane.f32.xlu0 %v255
        %v257 = vpop.xlane.xlu0 %256
        %v258 = vsel %vm246, %v254, 0.0
        %259 = vadd.xlane.f32.xlu0 %v258
        %v260 = vpop.xlane.xlu0 %259
        %v261 = vmul.f32 %v249, 0.015625
        %v262 = vmul.f32 %v252, 0.015625
        %v263 = vmul.f32 %v249, %v261
        %v264 = vmul.f32 %v252, %v262
        %v265 = vsub.f32 %v257, %v263
        %v266 = vsub.f32 %v260, %v264
        %v267 = vrcp.pop 63.0
        %v268 = vmul.f32 %v265, %v267
        %v269 = vmul.f32 %v266, %v267
        %v270 = vmax.f32 %v268, 0.0
        %v271 = vmax.f32 %v269, 0.0
        %v272 = vrsqrt.pop %v270
        %v273 = vmul.f32 %v270, %v272
        %vm274 = vcmp.eq.f32.partialorder %v270, inf
        %v275 = vsel %vm274, %v270, %v273
        %vm276 = vcmp.eq.f32.partialorder %v270, 0.0
        %v277 = vand.u32 %v270, 2147483648
        %v278 = vsel %vm276, %v277, %v275
        %v279 = vrsqrt.pop %v271
        %v280 = vmul.f32 %v271, %v279
        %vm281 = vcmp.eq.f32.partialorder %v271, inf
        %v282 = vsel %vm281, %v271, %v280
        %vm283 = vcmp.eq.f32.partialorder %v271, 0.0
        %v284 = vand.u32 %v271, 2147483648
        %v285 = vsel %vm283, %v284, %v282
        %v286 = vadd.f32 %v278, 1e-10
        %v287 = vadd.f32 %v285, 1e-10
        %v288 = vrcp.pop %v286
        %v289 = vmul.f32 1.0, %v288
        %v290 = vrcp.pop %v287
        %v291 = vmul.f32 1.0, %v290
        %v292 = vld [vmem:[%s235] sm:$0xff]
        %v293 = vld [vmem:[%s235 + $0x8] sm:$0xff]
        %v294 = vld [vmem:[%s241] sm:$0xff]
        %v295 = vld [vmem:[%s241 + $0x8] sm:$0xff]
        %v296 = vmul.f32 %v292, %v289
        %v297 = vmul.f32 %v293, %v291
        %v298 = vmul.f32 %v261, %v296
        %v299 = vmul.f32 %v262, %v297
        %v300 = vsub.f32 %v294, %v298
        %v301 = vsub.f32 %v295, %v299
        %303 = vset.pattern.permute.xlu0 0
        %304 = vperm.xlu0 %303, %v296
        %v305 = vpop.permute.xlu0 %304
        %308 = vset.pattern.permute.xlu0 0
        %309 = vperm.xlu0 %308, %v297
        %v310 = vpop.permute.xlu0 %309
        %v312 = vmul.f32 %v244, %v305
        %v313 = vmul.f32 %v245, %v310
        %315 = vset.pattern.permute.xlu0 0
        %316 = vperm.xlu0 %315, %v300
        %v317 = vpop.permute.xlu0 %316
        %320 = vset.pattern.permute.xlu0 0
        %321 = vperm.xlu0 %320, %v301
        %v322 = vpop.permute.xlu0 %321
        %v324 = vadd.f32 %v312, %v317
        %v325 = vadd.f32 %v313, %v322
        %326 = vst.msk [vmem:[%s220] sm:$0xff] %vm246, %v324
        %327 = vst.msk [vmem:[%s220 + $0x8] sm:$0xff] %vm246, %v325
        %s328 = sand.u32 %s119, 1
        %s329 = scalar_lea.sflag [#allocation3], %s328
        %s330 = sand.u32 %s119, 1
        %s331 = smul.addr %s330, 16
        %s332 = scalar_lea.vmem [#allocation2], %s331
        // Predicated region
        $region33: #{tpu_custom_call.1} parent=31 // pred_check
          %p333 = pneg %p129
        $region34: #{tpu_custom_call.1} parent=31 // pred_check_branch
          %335 = sbr.rel (%p333) target = $region36
        $region35: #{tpu_custom_call.1} parent=31 // pred_region
          %s336 = smul.u32 2, %s22
          %s338 = ssub.s32 256, 256
          %339 = vsyncadd %s329, %s338
          %s340 = smul.addr %s21, 2
          %s341 = sadd.s32 %s336, %s340
          %s342 = smul.addr %s341, 128
          %s343 = scalar_lea.hbm %s3, %s342
          %s344 = sshll.u32 %s332, 4
          %s345 = int_to_ptr.vmem [resolvable:$true] %s344
          %350 = dma.vmem_to_hbm [thread:$0]  %s345, 256, %s343, %s329, 128, 128, 8
        $region36: #{tpu_custom_call.1} parent=31 // pred_fallthru
          _
      $region32: #{tpu_custom_call.1} parent=5 // pred_fallthru
        _
      %p351 = scmp.le.s32.totalorder 2, %s12
      // Predicated region
      $region37: #{tpu_custom_call.1} parent=5 // pred_check
        %p352 = pneg %p351
      $region38: #{tpu_custom_call.1} parent=5 // pred_check_branch
        %354 = sbr.rel (%p352) target = $region40
      $region39: #{tpu_custom_call.1} parent=5 // pred_region
        %s355 = ssub.s32 %s12, 2
        // Predicated region
        $region41: #{tpu_custom_call.1} parent=39 // pred_check
          %p356 = pneg %p135
        $region42: #{tpu_custom_call.1} parent=39 // pred_check_branch
          %358 = sbr.rel (%p356) target = $region44
        $region43: #{tpu_custom_call.1} parent=39 // pred_region
          %s359 = sand.u32 %s120, 1
          %s360 = scalar_lea.sflag [#allocation3], %s359
          %s361 = sand.u32 %s120, 1
          %s362 = smul.addr %s361, 16
          %s363 = scalar_lea.vmem [#allocation2], %s362
          %364 = dma.done %s360, 256
        $region44: #{tpu_custom_call.1} parent=39 // pred_fallthru
          _
      $region40: #{tpu_custom_call.1} parent=5 // pred_fallthru
        _
    $region6: #{tpu_custom_call.1} parent=1 // loop_footer
      %s16 = sadd.s32 1, %s12
    $region7: #{tpu_custom_call.1} parent=1 // loop_footer_branch
      %11 = sbr.rel target = $region3
    $region8: #{tpu_custom_call.1} parent=1 // loop_exit
      _
    %365 = vsyncpa [#allocation3], 1
    %s366 = scalar_lea.sflag [#allocation3], 1
    %367 = vsyncpa %s366, 1

</llo_original>
